<compile_context>
chip_gen: v5e
topology: v5e:2x2
jax: 0.10.0
libtpu: 0.0.40
codegen_flags: <defaults>
</compile_context>

<pallas_src>
import jax
import jax.numpy as jnp
from jax.experimental import pallas as pl
from jax.experimental.pallas import tpu as pltpu


_PAD_LOGIT = -1e4   # exp(-1e4) == 0 exactly in f32 -> padded lanes add exactly 0


def _default_num_parallel():
    """2 when the chip has two TensorCores (v7x), else 1; safe fallback = 2."""
    try:
        info = pltpu.get_tpu_info()
        for name in ("num_cores", "core_count", "num_tensorcores", "tensor_core_count"):
            v = getattr(info, name, None)
            if isinstance(v, int) and v >= 1:
                return max(1, min(2, v))
    except Exception:
        pass
    return 2


def _lane_fold_128(x):
    """Sum the 128-lane column groups of an (R, K*128) f32 tile -> (R, 128).

    Uses only static, 128-aligned lane slices (no relayout); pairwise tree
    keeps dependency chains short.  Same VPU add count as a full-width
    accumulate, but the running state is a single 128-lane-wide buffer.
    """
    k = x.shape[1] // 128
    parts = [x[:, j * 128:(j + 1) * 128] for j in range(k)]
    while len(parts) > 1:
        nxt = [parts[j] + parts[j + 1] for j in range(0, len(parts) - 1, 2)]
        if len(parts) % 2:
            nxt.append(parts[-1])
        parts = nxt
    return parts[0]


def _combined_loss_kernel(pred_ref, tgt_ref, out_ref, bce_acc, inter_acc, den_acc):
    """One (ROWS, TILE) tile of the streamed BCE + Dice partial reduction.

    pred_ref, tgt_ref: (ROWS, TILE) logits / targets (native dtype, upcast here),
                       ROWS = 8 * batch (8 contiguous rows per sample).
    out_ref:           (1, 3, ROWS, 128) partials [bce, intersection, sig+tgt].
    *_acc:             (ROWS, 128) f32 VMEM accumulators.
    """
    i = pl.program_id(1)          # sequential D-tile inside this super-chunk

    x = pred_ref[...].astype(jnp.float32)   # logits
    z = tgt_ref[...].astype(jnp.float32)    # targets in [0, 1]

    # One shared transcendental: e = exp(-|x|).
    e = jnp.exp(-jnp.abs(x))
    # Numerically stable BCE-with-logits: max(x,0) - x*z + log1p(exp(-|x|)).
    bce_elem = jnp.maximum(x, 0.0) - x * z + jnp.log1p(e)
    # sigmoid(x) = where(x>=0, 1, e) / (1 + e).  Exact divide kept for 1e-5 tol.
    sig = jnp.where(x >= 0.0, 1.0, e) / (1.0 + e)

    bce_p = _lane_fold_128(bce_elem)
    inter_p = _lane_fold_128(sig * z)
    den_p = _lane_fold_128(sig + z)          # pred_sum + target_sum combined

    @pl.when(i == 0)
    def _init():
        bce_acc[...] = bce_p
        inter_acc[...] = inter_p
        den_acc[...] = den_p

    @pl.when(i > 0)
    def _accumulate():
        bce_acc[...] += bce_p
        inter_acc[...] += inter_p
        den_acc[...] += den_p

    @pl.when(i == pl.num_programs(1) - 1)
    def _finalize():
        out_ref[0, 0, :, :] = bce_acc[...]
        out_ref[0, 1, :, :] = inter_acc[...]
        out_ref[0, 2, :, :] = den_acc[...]


def combined_loss(pred, target, bce_weight=0.5, dice_weight=0.5, smooth=1e-6,
                  *, tile_lanes_max=16384, num_parallel=None,
                  vmem_budget=8 * 1024 * 1024):
    """pred, target: (N, C, H, W) arrays (NCHW, same as PyTorch). Any float dtype."""
    n = int(pred.shape[0])
    d = 1
    for s in pred.shape[1:]:
        d *= int(s)

    rows = 8 * n
    if num_parallel is None:
        num_parallel = _default_num_parallel()

    # --- tiling geometry, counted in 128-lane column groups of the (rows, D/8)
    #     layout; one column group == 8*128 = 1024 original elements ----------
    num_cols = pl.cdiv(d, 8 * 128)
    np_eff = max(1, min(num_parallel, num_cols))
    cols_per_chunk = pl.cdiv(num_cols, np_eff)

    in_itemsize = max(jnp.dtype(pred.dtype).itemsize, jnp.dtype(target.dtype).itemsize)
    # 2 inputs x 2 pipeline buffers x (rows, 128) bytes per column group.
    bytes_per_col = rows * 128 * 2 * 2 * in_itemsize
    tile_cols_cap = max(1, vmem_budget // bytes_per_col)
    tile_cols = max(1, min(tile_lanes_max // 128, tile_cols_cap, cols_per_chunk))
    tiles_per_chunk = pl.cdiv(cols_per_chunk, tile_cols)
    # Rebalance so the last tile is not mostly padding (never exceeds the cap).
    tile_cols = pl.cdiv(cols_per_chunk, tiles_per_chunk)
    tile_d = tile_cols * 128

    d8 = np_eff * tiles_per_chunk * tile_d    # padded per-row length
    d_pad = 8 * d8

    pred_flat = pred.reshape(n, d)
    tgt_flat = target.reshape(n, d)
    if d_pad != d:
        # Pad logits with a large finite negative (NOT -inf) and targets with 0:
        # padded elements then contribute exactly 0 to every partial sum, so no
        # in-kernel masking is ever needed.  The aligned case skips this pass.
        pred_flat = jnp.pad(pred_flat, ((0, 0), (0, d_pad - d)),
                            constant_values=_PAD_LOGIT)
        tgt_flat = jnp.pad(tgt_flat, ((0, 0), (0, d_pad - d)),
                           constant_values=0.0)

    # 8 contiguous rows per sample -> every (8,128) vreg is fully occupied.
    pred_2d = pred_flat.reshape(rows, d8)
    tgt_2d = tgt_flat.reshape(rows, d8)

    in_map = lambda p, i: (0, p * tiles_per_chunk + i)

    partial = pl.pallas_call(
        _combined_loss_kernel,
        out_shape=jax.ShapeDtypeStruct((np_eff, 3, rows, 128), jnp.float32),
        grid_spec=pltpu.PrefetchScalarGridSpec(
            num_scalar_prefetch=0,
            grid=(np_eff, tiles_per_chunk),
            in_specs=[
                pl.BlockSpec((rows, tile_d), in_map),
                pl.BlockSpec((rows, tile_d), in_map),
            ],
            out_specs=pl.BlockSpec((1, 3, rows, 128), lambda p, i: (p, 0, 0, 0)),
            scratch_shapes=[pltpu.VMEM((rows, 128), jnp.float32)] * 3,
        ),
        compiler_params=pltpu.CompilerParams(
            dimension_semantics=("parallel", "arbitrary"),
            vmem_limit_bytes=32 * 1024 * 1024,
        ),
    )(pred_2d, tgt_2d)

    # Tiny JAX epilogue: (np_eff, 3, rows, 128) partials -> scalar loss.
    sums = jnp.sum(partial, axis=(0, 3))                 # (3, rows)
    per_sample = jnp.sum(sums.reshape(3, n, 8), axis=2)  # (3, n)

    bce = jnp.sum(per_sample[0]) / (n * d)               # mean over every element
    inter = per_sample[1]
    den = per_sample[2]                                  # pred_sum + target_sum
    dice = (2.0 * inter + smooth) / (den + smooth)
    dice_loss = 1.0 - jnp.mean(dice)

    return bce_weight * bce + dice_weight * dice_loss


if __name__ == "__main__":
    key = jax.random.PRNGKey(0)
    k1, k2, k3, k4, k5, k6 = jax.random.split(key, 6)

    # Pure-JAX reference (matches torch BCEWithLogitsLoss + DiceLoss).
    def ref_loss(pred, target, bce_weight=0.5, dice_weight=0.5, smooth=1e-6):
        nb = pred.shape[0]
        x = pred.reshape(nb, -1).astype(jnp.float32)
        z = target.reshape(nb, -1).astype(jnp.float32)
        bce = jnp.mean(jnp.maximum(x, 0.0) - x * z + jnp.log1p(jnp.exp(-jnp.abs(x))))
        sig = jax.nn.sigmoid(x)
        inter = jnp.sum(sig * z, axis=1)
        dice = (2.0 * inter + smooth) / (jnp.sum(sig, axis=1) + jnp.sum(z, axis=1) + smooth)
        return bce_weight * bce + dice_weight * (1.0 - jnp.mean(dice))

    # 1) Aligned segmentation shape (no padding path): (N, C, H, W).
    N, C, H, W = 2, 4, 16, 16
    pred = jax.random.normal(k1, (N, C, H, W), dtype=jnp.float32)               # logits
    target = (jax.random.uniform(k2, (N, C, H, W)) > 0.5).astype(jnp.float32)   # 0/1 mask
    loss = jax.jit(combined_loss)(pred, target)
    jax.block_until_ready(loss)
    ref = jax.block_until_ready(ref_loss(pred, target))
    assert jnp.allclose(loss, ref, rtol=1e-5, atol=1e-5), (loss, ref)

    # 2) Ragged shape (exercises the pad-value path; still no in-kernel mask).
    pred2 = jax.random.normal(k3, (2, 3, 7, 9), dtype=jnp.float32)
    target2 = (jax.random.uniform(k4, (2, 3, 7, 9)) > 0.5).astype(jnp.float32)
    loss2 = jax.jit(combined_loss)(pred2, target2)
    jax.block_until_ready(loss2)
    ref2 = jax.block_until_ready(ref_loss(pred2, target2))
    assert jnp.allclose(loss2, ref2, rtol=1e-5, atol=1e-5), (loss2, ref2)

    # 3) Multi-tile + two parallel super-chunks (exercises accumulate/finalize).
    pred3 = jax.random.normal(k5, (2, 4, 32, 32), dtype=jnp.float32)
    target3 = (jax.random.uniform(k6, (2, 4, 32, 32)) > 0.5).astype(jnp.float32)
    loss3 = combined_loss(pred3, target3, num_parallel=2, tile_lanes_max=128)
    jax.block_until_ready(loss3)
    ref3 = jax.block_until_ready(ref_loss(pred3, target3))
    assert jnp.allclose(loss3, ref3, rtol=1e-5, atol=1e-5), (loss3, ref3)

    print("KERNEL_OK")
</pallas_src>

<mosaic_0001>
module attributes {stable_mosaic.version = 11 : i64} {
  func.func @_combined_loss_kernel(%arg0: i32, %arg1: i32, %arg2: memref<16x128xf32, #tpu.memory_space<vmem>>, %arg3: memref<16x128xf32, #tpu.memory_space<vmem>>, %arg4: memref<1x3x16x128xf32, #tpu.memory_space<vmem>>, %arg5: memref<16x128xf32, #tpu.memory_space<vmem>>, %arg6: memref<16x128xf32, #tpu.memory_space<vmem>>, %arg7: memref<16x128xf32, #tpu.memory_space<vmem>>) attributes {dimension_semantics = [#tpu.dimension_semantics<parallel>, #tpu.dimension_semantics<arbitrary>], iteration_bounds = array<i64: 1, 1>, scalar_prefetch = 0 : i64, scratch_operands = 3 : i64, tpu.core_type = #tpu.core_type<tc>, window_params = [{transform_indices = @transform_0, window_bounds = array<i64: 16, 128>}, {transform_indices = @transform_1, window_bounds = array<i64: 16, 128>}, {transform_indices = @transform_2, window_bounds = array<i64: 1, 3, 16, 128>}]} {
    %c0 = arith.constant 0 : index
    %c0_0 = arith.constant 0 : index
    %0 = vector.load %arg2[%c0, %c0_0] : memref<16x128xf32, #tpu.memory_space<vmem>>, vector<16x128xf32>
    %c0_1 = arith.constant 0 : index
    %c0_2 = arith.constant 0 : index
    %1 = vector.load %arg3[%c0_1, %c0_2] : memref<16x128xf32, #tpu.memory_space<vmem>>, vector<16x128xf32>
    %2 = math.absf %0 : vector<16x128xf32>
    %cst = arith.constant 0.000000e+00 : f32
    %3 = vector.broadcast %cst : f32 to vector<16x128xf32>
    %4 = arith.subf %3, %2 : vector<16x128xf32>
    %5 = math.exp %4 : vector<16x128xf32>
    %cst_3 = arith.constant 0.000000e+00 : f32
    %6 = vector.broadcast %cst_3 : f32 to vector<16x128xf32>
    %7 = arith.maximumf %0, %6 : vector<16x128xf32>
    %8 = arith.mulf %0, %1 : vector<16x128xf32>
    %9 = arith.subf %7, %8 : vector<16x128xf32>
    %10 = math.log1p %5 : vector<16x128xf32>
    %11 = arith.addf %9, %10 : vector<16x128xf32>
    %cst_4 = arith.constant 0.000000e+00 : f32
    %12 = vector.broadcast %cst_4 : f32 to vector<16x128xf32>
    %13 = arith.cmpf oge, %0, %12 : vector<16x128xf32>
    %cst_5 = arith.constant 1.000000e+00 : f32
    %14 = vector.broadcast %cst_5 : f32 to vector<16x128xf32>
    %15 = arith.select %13, %14, %5 : vector<16x128xi1>, vector<16x128xf32>
    %cst_6 = arith.constant 1.000000e+00 : f32
    %16 = vector.broadcast %cst_6 : f32 to vector<16x128xf32>
    %17 = arith.addf %16, %5 : vector<16x128xf32>
    %18 = arith.divf %15, %17 : vector<16x128xf32>
    %19 = arith.mulf %18, %1 : vector<16x128xf32>
    %20 = arith.addf %18, %1 : vector<16x128xf32>
    %c0_i32 = arith.constant 0 : i32
    %21 = arith.cmpi eq, %arg1, %c0_i32 : i32
    %22 = arith.extui %21 : i1 to i32
    %c0_i32_7 = arith.constant 0 : i32
    %23 = arith.cmpi ne, %22, %c0_i32_7 : i32
    scf.if %23 {
      %c0_12 = arith.constant 0 : index
      %c0_13 = arith.constant 0 : index
      %30 = vector.load %arg5[%c0_12, %c0_13] : memref<16x128xf32, #tpu.memory_space<vmem>>, vector<16x128xf32>
      tpu.vector_store %arg5[%c0_12, %c0_13], %11 {strides = array<i32>} : memref<16x128xf32, #tpu.memory_space<vmem>>, vector<16x128xf32>,
      %c0_14 = arith.constant 0 : index
      %c0_15 = arith.constant 0 : index
      %31 = vector.load %arg6[%c0_14, %c0_15] : memref<16x128xf32, #tpu.memory_space<vmem>>, vector<16x128xf32>
      tpu.vector_store %arg6[%c0_14, %c0_15], %19 {strides = array<i32>} : memref<16x128xf32, #tpu.memory_space<vmem>>, vector<16x128xf32>,
      %c0_16 = arith.constant 0 : index
      %c0_17 = arith.constant 0 : index
      %32 = vector.load %arg7[%c0_16, %c0_17] : memref<16x128xf32, #tpu.memory_space<vmem>>, vector<16x128xf32>
      tpu.vector_store %arg7[%c0_16, %c0_17], %20 {strides = array<i32>} : memref<16x128xf32, #tpu.memory_space<vmem>>, vector<16x128xf32>,
    } else {
    }
    %c0_i32_8 = arith.constant 0 : i32
    %24 = arith.cmpi sgt, %arg1, %c0_i32_8 : i32
    %25 = arith.extui %24 : i1 to i32
    %c0_i32_9 = arith.constant 0 : i32
    %26 = arith.cmpi ne, %25, %c0_i32_9 : i32
    scf.if %26 {
      %c0_12 = arith.constant 0 : index
      %c0_13 = arith.constant 0 : index
      %30 = vector.load %arg5[%c0_12, %c0_13] : memref<16x128xf32, #tpu.memory_space<vmem>>, vector<16x128xf32>
      %31 = arith.addf %30, %11 : vector<16x128xf32>
      %c0_14 = arith.constant 0 : index
      %c0_15 = arith.constant 0 : index
      %32 = vector.load %arg5[%c0_14, %c0_15] : memref<16x128xf32, #tpu.memory_space<vmem>>, vector<16x128xf32>
      tpu.vector_store %arg5[%c0_14, %c0_15], %31 {strides = array<i32>} : memref<16x128xf32, #tpu.memory_space<vmem>>, vector<16x128xf32>,
      %c0_16 = arith.constant 0 : index
      %c0_17 = arith.constant 0 : index
      %33 = vector.load %arg6[%c0_16, %c0_17] : memref<16x128xf32, #tpu.memory_space<vmem>>, vector<16x128xf32>
      %34 = arith.addf %33, %19 : vector<16x128xf32>
      %c0_18 = arith.constant 0 : index
      %c0_19 = arith.constant 0 : index
      %35 = vector.load %arg6[%c0_18, %c0_19] : memref<16x128xf32, #tpu.memory_space<vmem>>, vector<16x128xf32>
      tpu.vector_store %arg6[%c0_18, %c0_19], %34 {strides = array<i32>} : memref<16x128xf32, #tpu.memory_space<vmem>>, vector<16x128xf32>,
      %c0_20 = arith.constant 0 : index
      %c0_21 = arith.constant 0 : index
      %36 = vector.load %arg7[%c0_20, %c0_21] : memref<16x128xf32, #tpu.memory_space<vmem>>, vector<16x128xf32>
      %37 = arith.addf %36, %20 : vector<16x128xf32>
      %c0_22 = arith.constant 0 : index
      %c0_23 = arith.constant 0 : index
      %38 = vector.load %arg7[%c0_22, %c0_23] : memref<16x128xf32, #tpu.memory_space<vmem>>, vector<16x128xf32>
      tpu.vector_store %arg7[%c0_22, %c0_23], %37 {strides = array<i32>} : memref<16x128xf32, #tpu.memory_space<vmem>>, vector<16x128xf32>,
    } else {
    }
    %c0_i32_10 = arith.constant 0 : i32
    %27 = arith.cmpi eq, %arg1, %c0_i32_10 : i32
    %28 = arith.extui %27 : i1 to i32
    %c0_i32_11 = arith.constant 0 : i32
    %29 = arith.cmpi ne, %28, %c0_i32_11 : i32
    scf.if %29 {
      %c0_12 = arith.constant 0 : index
      %c0_13 = arith.constant 0 : index
      %30 = vector.load %arg5[%c0_12, %c0_13] : memref<16x128xf32, #tpu.memory_space<vmem>>, vector<16x128xf32>
      %c0_14 = arith.constant 0 : index
      %c0_15 = arith.constant 0 : index
      %c0_16 = arith.constant 0 : index
      %c0_17 = arith.constant 0 : index
      %31 = vector.load %arg4[%c0_14, %c0_15, %c0_16, %c0_17] : memref<1x3x16x128xf32, #tpu.memory_space<vmem>>, vector<1x1x16x128xf32>
      %32 = vector.shape_cast %31 : vector<1x1x16x128xf32> to vector<16x128xf32>
      %33 = vector.shape_cast %30 : vector<16x128xf32> to vector<1x1x16x128xf32>
      tpu.vector_store %arg4[%c0_14, %c0_15, %c0_16, %c0_17], %33 {strides = array<i32>} : memref<1x3x16x128xf32, #tpu.memory_space<vmem>>, vector<1x1x16x128xf32>,
      %c0_18 = arith.constant 0 : index
      %c0_19 = arith.constant 0 : index
      %34 = vector.load %arg6[%c0_18, %c0_19] : memref<16x128xf32, #tpu.memory_space<vmem>>, vector<16x128xf32>
      %c0_20 = arith.constant 0 : index
      %c1 = arith.constant 1 : index
      %c0_21 = arith.constant 0 : index
      %c0_22 = arith.constant 0 : index
      %35 = vector.load %arg4[%c0_20, %c1, %c0_21, %c0_22] : memref<1x3x16x128xf32, #tpu.memory_space<vmem>>, vector<1x1x16x128xf32>
      %36 = vector.shape_cast %35 : vector<1x1x16x128xf32> to vector<16x128xf32>
      %37 = vector.shape_cast %34 : vector<16x128xf32> to vector<1x1x16x128xf32>
      tpu.vector_store %arg4[%c0_20, %c1, %c0_21, %c0_22], %37 {strides = array<i32>} : memref<1x3x16x128xf32, #tpu.memory_space<vmem>>, vector<1x1x16x128xf32>,
      %c0_23 = arith.constant 0 : index
      %c0_24 = arith.constant 0 : index
      %38 = vector.load %arg7[%c0_23, %c0_24] : memref<16x128xf32, #tpu.memory_space<vmem>>, vector<16x128xf32>
      %c0_25 = arith.constant 0 : index
      %c2 = arith.constant 2 : index
      %c0_26 = arith.constant 0 : index
      %c0_27 = arith.constant 0 : index
      %39 = vector.load %arg4[%c0_25, %c2, %c0_26, %c0_27] : memref<1x3x16x128xf32, #tpu.memory_space<vmem>>, vector<1x1x16x128xf32>
      %40 = vector.shape_cast %39 : vector<1x1x16x128xf32> to vector<16x128xf32>
      %41 = vector.shape_cast %38 : vector<16x128xf32> to vector<1x1x16x128xf32>
      tpu.vector_store %arg4[%c0_25, %c2, %c0_26, %c0_27], %41 {strides = array<i32>} : memref<1x3x16x128xf32, #tpu.memory_space<vmem>>, vector<1x1x16x128xf32>,
    } else {
    }
    return
  }
  func.func @transform_0(%arg0: i32, %arg1: i32) -> (i32, i32) {
    %c1_i32 = arith.constant 1 : i32
    %0 = arith.muli %arg0, %c1_i32 : i32
    %1 = arith.addi %0, %arg1 : i32
    %c0_i32 = arith.constant 0 : i32
    %c0_i32_0 = arith.constant 0 : i32
    return %c0_i32, %1 : i32, i32
  }
  func.func @transform_1(%arg0: i32, %arg1: i32) -> (i32, i32) {
    %c1_i32 = arith.constant 1 : i32
    %0 = arith.muli %arg0, %c1_i32 : i32
    %1 = arith.addi %0, %arg1 : i32
    %c0_i32 = arith.constant 0 : i32
    %c0_i32_0 = arith.constant 0 : i32
    return %c0_i32, %1 : i32, i32
  }
  func.func @transform_2(%arg0: i32, %arg1: i32) -> (i32, i32, i32, i32) {
    %c0_i32 = arith.constant 0 : i32
    %c0_i32_0 = arith.constant 0 : i32
    %c0_i32_1 = arith.constant 0 : i32
    %c0_i32_2 = arith.constant 0 : i32
    return %arg0, %c0_i32, %c0_i32_0, %c0_i32_1 : i32, i32, i32, i32
  }
}

</mosaic_0001>

<llo_original>
// kernel: combined_loss.1
$region0: #{combined_loss.1}
  #allocation0 [shape = 'u32[]', space=smem, size = 0x4, offset = 0x4, fixed_abs, tag = 'smem constant byte address 0x4 - core index']
  #allocation1 [shape = 'u32[72,128]{1,0:T(1,128)}', space=vmem, size = 0x9000, scoped, tag = 'internal scratch']
  #allocation2 [shape = 'f32[16,128]{1,0:T(8,128)}', space=vmem, size = 0x2000, scoped, tag = 'scratch operand']
  #allocation3 [shape = 'f32[16,128]{1,0:T(8,128)}', space=vmem, size = 0x2000, scoped, tag = 'scratch operand']
  #allocation4 [shape = 'f32[16,128]{1,0:T(8,128)}', space=vmem, size = 0x2000, scoped, tag = 'scratch operand']
  %s0 = inlined_call_operand.vmem [shape: f32[16,128], index: 0, kind: input, shape index: {}]
  %s1 = inlined_call_operand.vmem [shape: f32[16,128], index: 1, kind: input, shape index: {}]
  %s2 = inlined_call_operand.vmem [shape: f32[1,3,16,128], index: 2, kind: output, shape index: {}]
  %s3 = sld [smem:[#allocation0]]
  $region30: #{combined_loss.1} parent=0
    _
  %s5 = ssub.s32 1, %s3
  %s6 = scalar_select 0, %s5, %s3
  // Predicated region
  $region2: #{combined_loss.1} parent=0 // pred_check
    _
  $region3: #{combined_loss.1} parent=0 // pred_check_branch
    %8 = sbr.rel (0) target = $region5
  $region4: #{combined_loss.1} parent=0 // pred_region
    %s9 = sadd.s32 0, 0
    %p10 = scmp.lt.s32.totalorder %s9, 0
    %s11 = scalar_select %p10, %s9, 0
    %s12 = smul.addr %s11, 8
    %s13 = scalar_lea.vmem %s0, %s12
    %s14 = sadd.s32 0, 0
  $region5: #{combined_loss.1} parent=0 // pred_fallthru
    _
  // Predicated region
  $region6: #{combined_loss.1} parent=0 // pred_check
    _
  $region7: #{combined_loss.1} parent=0 // pred_check_branch
    %16 = sbr.rel (0) target = $region9
  $region8: #{combined_loss.1} parent=0 // pred_region
    %s17 = sadd.s32 0, 0
    %p18 = scmp.lt.s32.totalorder %s17, 0
    %s19 = scalar_select %p18, %s17, 0
    %s20 = smul.addr %s19, 8
    %s21 = scalar_lea.vmem %s1, %s20
    %s22 = sadd.s32 0, 0
  $region9: #{combined_loss.1} parent=0 // pred_fallthru
    _
  %s23 = sadd.s32 0, 0
  %p24 = scmp.lt.s32.totalorder %s23, 0
  %s25 = scalar_select %p24, %s23, 0
  %s26 = smul.addr %s25, 8
  %s27 = scalar_lea.vmem %s0, %s26
  %s28 = sadd.s32 0, 0
  %p29 = scmp.lt.s32.totalorder %s28, 0
  %s30 = scalar_select %p29, %s28, 0
  %s31 = smul.addr %s30, 8
  %s32 = scalar_lea.vmem %s1, %s31
  %s33 = sadd.s32 0, 0
  %p34 = scmp.lt.s32.totalorder %s33, 0
  %s35 = scalar_select %p34, %s33, 0
  %s36 = smul.addr %s35, 8
  %s37 = scalar_lea.vmem %s0, %s36
  %s38 = sadd.s32 0, 0
  %s39 = sadd.s32 0, 0
  %p40 = scmp.lt.s32.totalorder %s39, 0
  %s41 = scalar_select %p40, %s39, 0
  %s42 = smul.addr %s41, 8
  %s43 = scalar_lea.vmem %s1, %s42
  %s44 = sadd.s32 0, 0
  %v45 = vld [vmem:[%s37] sm:$0xff]
  %v46 = vld [vmem:[%s37 + $0x8] sm:$0xff]
  %v47 = vld [vmem:[%s43] sm:$0xff]
  %v48 = vld [vmem:[%s43 + $0x8] sm:$0xff]
  %v49 = vand.u32 2147483647, %v45
  %v50 = vand.u32 2147483647, %v46
  %v51 = vsub.f32 0.0, %v49
  %v52 = vsub.f32 0.0, %v50
  %v53 = vmul.f32 %v51, 1.442695
  %v54 = vpow.pop %v53
  %v55 = vmul.f32 %v52, 1.442695
  %v56 = vpow.pop %v55
  %v57 = vmax.f32 %v45, 0.0
  %v58 = vmax.f32 %v46, 0.0
  %v59 = vmul.f32 %v45, %v47
  %v60 = vmul.f32 %v46, %v48
  %v61 = vsub.f32 %v57, %v59
  %v62 = vsub.f32 %v58, %v60
  %v63 = vadd.f32 %v54, 1.0
  %v64 = vlog2.pop %v63
  %v65 = vmul.f32 %v64, 0.6931472
  %v66 = vmul.f32 -0.5, %v54
  %v67 = vadd.f32 %v66, 1.0
  %v68 = vmul.f32 %v67, %v54
  %v69 = vand.u32 2147483647, %v54
  %vm70 = vcmp.lt.f32.partialorder %v69, 0.0004427343
  %v71 = vsel %vm70, %v68, %v65
  %v72 = vadd.f32 %v56, 1.0
  %v73 = vlog2.pop %v72
  %v74 = vmul.f32 %v73, 0.6931472
  %v75 = vmul.f32 -0.5, %v56
  %v76 = vadd.f32 %v75, 1.0
  %v77 = vmul.f32 %v76, %v56
  %v78 = vand.u32 2147483647, %v56
  %vm79 = vcmp.lt.f32.partialorder %v78, 0.0004427343
  %v80 = vsel %vm79, %v77, %v74
  %v81 = vadd.f32 %v61, %v71
  %v82 = vadd.f32 %v62, %v80
  %vm83 = vcmp.ge.f32.partialorder %v45, 0.0
  %vm84 = vcmp.ge.f32.partialorder %v46, 0.0
  %v85 = vsel %vm83, 1.0, %v54
  %v86 = vsel %vm84, 1.0, %v56
  %v87 = vadd.f32 %v54, 1.0
  %v88 = vadd.f32 %v56, 1.0
  %v89 = vrcp.pop %v87
  %v90 = vmul.f32 %v87, %v89
  %v91 = vsub.f32 1.0, %v90
  %v92 = vmul.f32 %v89, %v91
  %v93 = vadd.f32 %v89, %v92
  %vm94 = vweird.f32 %v87
  %vm95 = vweird.f32 %v89
  %vm96 = vmor %vm94, %vm95
  %v97 = vsel %vm96, %v89, %v93
  %v98 = vand.u32 2147483647, %v87
  %vm99 = vcmp.eq.f32.partialorder %v98, 8.507059e+37
  %v100 = vand.u32 %v87, 2147483648
  %v101 = vor.u32 1.1754944e-38, %v100
  %v102 = vsel %vm99, %v101, %v97
  %v103 = vmul.f32 %v85, %v102
  %v104 = vrcp.pop %v88
  %v105 = vmul.f32 %v88, %v104
  %v106 = vsub.f32 1.0, %v105
  %v107 = vmul.f32 %v104, %v106
  %v108 = vadd.f32 %v104, %v107
  %vm109 = vweird.f32 %v88
  %vm110 = vweird.f32 %v104
  %vm111 = vmor %vm109, %vm110
  %v112 = vsel %vm111, %v104, %v108
  %v113 = vand.u32 2147483647, %v88
  %vm114 = vcmp.eq.f32.partialorder %v113, 8.507059e+37
  %v115 = vand.u32 %v88, 2147483648
  %v116 = vor.u32 1.1754944e-38, %v115
  %v117 = vsel %vm114, %v116, %v112
  %v118 = vmul.f32 %v86, %v117
  %v119 = vmul.f32 %v103, %v47
  %v120 = vmul.f32 %v118, %v48
  %v121 = vadd.f32 %v103, %v47
  %v122 = vadd.f32 %v118, %v48
  %p123 = scmp.eq.s32.totalorder 0, 0
  // Predicated region
  $region10: #{combined_loss.1} parent=0 // pred_check
    %p124 = pneg %p123
  $region11: #{combined_loss.1} parent=0 // pred_check_branch
    %126 = sbr.rel (%p124) target = $region13
  $region12: #{combined_loss.1} parent=0 // pred_region
    %127 = vst [vmem:[#allocation2] sm:$0xff] %v81
    %128 = vst [vmem:[#allocation2 + $0x8] sm:$0xff] %v82
    %129 = vst [vmem:[#allocation3] sm:$0xff] %v119
    %130 = vst [vmem:[#allocation3 + $0x8] sm:$0xff] %v120
    %131 = vst [vmem:[#allocation4] sm:$0xff] %v121
    %132 = vst [vmem:[#allocation4 + $0x8] sm:$0xff] %v122
  $region13: #{combined_loss.1} parent=0 // pred_fallthru
    _
  %p133 = scmp.gt.s32.totalorder 0, 0
  // Predicated region
  $region14: #{combined_loss.1} parent=0 // pred_check
    %p134 = pneg %p133
  $region15: #{combined_loss.1} parent=0 // pred_check_branch
    %136 = sbr.rel (%p134) target = $region17
  $region16: #{combined_loss.1} parent=0 // pred_region
    %v137 = vld [vmem:[#allocation2] sm:$0xff]
    %v138 = vld [vmem:[#allocation2 + $0x8] sm:$0xff]
    %v139 = vadd.f32 %v137, %v81
    %v140 = vadd.f32 %v138, %v82
    %141 = vst [vmem:[#allocation2] sm:$0xff] %v139
    %142 = vst [vmem:[#allocation2 + $0x8] sm:$0xff] %v140
    %v143 = vld [vmem:[#allocation3] sm:$0xff]
    %v144 = vld [vmem:[#allocation3 + $0x8] sm:$0xff]
    %v145 = vadd.f32 %v143, %v119
    %v146 = vadd.f32 %v144, %v120
    %147 = vst [vmem:[#allocation3] sm:$0xff] %v145
    %148 = vst [vmem:[#allocation3 + $0x8] sm:$0xff] %v146
    %v149 = vld [vmem:[#allocation4] sm:$0xff]
    %v150 = vld [vmem:[#allocation4 + $0x8] sm:$0xff]
    %v151 = vadd.f32 %v149, %v121
    %v152 = vadd.f32 %v150, %v122
    %153 = vst [vmem:[#allocation4] sm:$0xff] %v151
    %154 = vst [vmem:[#allocation4 + $0x8] sm:$0xff] %v152
  $region17: #{combined_loss.1} parent=0 // pred_fallthru
    _
  // Predicated region
  $region18: #{combined_loss.1} parent=0 // pred_check
    %p155 = pneg %p123
  $region19: #{combined_loss.1} parent=0 // pred_check_branch
    %157 = sbr.rel (%p155) target = $region21
  $region20: #{combined_loss.1} parent=0 // pred_region
    %v158 = vld [vmem:[#allocation2] sm:$0xff]
    %v159 = vld [vmem:[#allocation2 + $0x8] sm:$0xff]
    %160 = vst [vmem:[%s2] sm:$0xff] %v158
    %161 = vst [vmem:[%s2 + $0x8] sm:$0xff] %v159
    %v162 = vld [vmem:[#allocation3] sm:$0xff]
    %v163 = vld [vmem:[#allocation3 + $0x8] sm:$0xff]
    %s164 = scalar_lea.vmem %s2, 16
    %165 = vst [vmem:[%s164] sm:$0xff] %v162
    %166 = vst [vmem:[%s164 + $0x8] sm:$0xff] %v163
    %v167 = vld [vmem:[#allocation4] sm:$0xff]
    %v168 = vld [vmem:[#allocation4 + $0x8] sm:$0xff]
    %s169 = scalar_lea.vmem %s2, 32
    %170 = vst [vmem:[%s169] sm:$0xff] %v167
    %171 = vst [vmem:[%s169 + $0x8] sm:$0xff] %v168
  $region21: #{combined_loss.1} parent=0 // pred_fallthru
    _
  // Predicated region
  $region22: #{combined_loss.1} parent=0 // pred_check
    _
  $region23: #{combined_loss.1} parent=0 // pred_check_branch
    %173 = sbr.rel (0) target = $region25
  $region24: #{combined_loss.1} parent=0 // pred_region
    _
  $region25: #{combined_loss.1} parent=0 // pred_fallthru
    _
  // Predicated region
  $region26: #{combined_loss.1} parent=0 // pred_check
    _
  $region27: #{combined_loss.1} parent=0 // pred_check_branch
    %175 = sbr.rel (0) target = $region29
  $region28: #{combined_loss.1} parent=0 // pred_region
    _
  $region29: #{combined_loss.1} parent=0 // pred_fallthru
    _

</llo_original>
